<compile_context>
chip_gen: v7x
topology: tpu7x:2x2x1
jax: 0.10.0
libtpu: 0.0.40
codegen_flags: <defaults>
</compile_context>

<pallas_src>
import functools

import jax
import jax.numpy as jnp
from jax.experimental import pallas as pl
from jax.experimental.pallas import tpu as pltpu


def graphsage_kernel(xn_ref, xe_ref, A_ref, B_ref, inv_deg_ref,
                     w1_ref, b1_ref, w2_ref, b2_ref, out_ref, *, H):
    f32 = jnp.float32
    bf = jnp.bfloat16

    xn = xn_ref[...]             # (N, Fn) f32 node features
    xe = xe_ref[...]             # (E, Fe) f32 edge features
    A = A_ref[...]               # (N, N)  f32 integer in-edge counts   A[i,j] = #(j->i)
    B = B_ref[...]               # (N, E)  f32 0/1 incidence            B[i,e] = [dst(e)==i]
    inv_deg = inv_deg_ref[...]   # (N, 1)  f32 1/max(in_deg, 1)

    # ---- g.update_all(copy_e, mean): per-destination mean of incoming edge features ----
    h_e = jnp.dot(B, xe, preferred_element_type=f32) * inv_deg            # (N, Fe) f32

    # ---- conv1: single fused K=Fn+Fe projection  z1 = [xn | h_e] @ [W1_self | W1_neigh] ----
    h0 = jnp.concatenate([xn, h_e], axis=1).astype(bf)                    # (N, Fn+Fe) bf16
    z1 = jnp.dot(h0, w1_ref[...], preferred_element_type=f32)             # (N, 2H) f32
    # Mean aggregation, reassociated:  (A_mean @ h0) @ Wn == diag(inv_deg) @ (A @ (h0 @ Wn))
    agg1 = jnp.dot(A, z1[:, H:], preferred_element_type=f32) * inv_deg    # (N, H) f32
    h1 = jnp.maximum(z1[:, :H] + agg1 + b1_ref[...], 0.0)                 # ReLU, f32

    # ---- conv2: same structure with fused [W2_self | W2_neigh] ----
    z2 = jnp.dot(h1.astype(bf), w2_ref[...], preferred_element_type=f32)  # (N, 2H) f32
    agg2 = jnp.dot(A, z2[:, H:], preferred_element_type=f32) * inv_deg    # (N, H) f32
    out_ref[...] = z2[:, :H] + agg2 + b2_ref[...]                         # (N, H) f32


@functools.partial(jax.jit, static_argnames=("H",))
def graphsage_forward(xn, xe, A_count, B_count, inv_deg, w1, b1, w2, b2, *, H):
    """Hot path: just the kernel. Returns the padded lane-dense (N, H) slab."""
    N = xn.shape[0]
    args = (xn, xe, A_count, B_count, inv_deg, w1, b1, w2, b2)
    return pl.pallas_call(
        functools.partial(graphsage_kernel, H=H),
        out_shape=jax.ShapeDtypeStruct((N, H), jnp.float32),
        in_specs=[pl.BlockSpec(memory_space=pltpu.MemorySpace.VMEM)] * len(args),
        out_specs=pl.BlockSpec(memory_space=pltpu.MemorySpace.VMEM),
    )(*args)


def build_graph_mats(src, dst, num_nodes, num_edges):
    """One-time graph prep: exact integer count/incidence operators + f32 inverse degree."""
    ones = jnp.ones((num_edges,), jnp.float32)
    in_deg = jnp.zeros((num_nodes,), jnp.float32).at[dst].add(ones)
    inv_deg = (1.0 / jnp.maximum(in_deg, 1.0))[:, None]                  # (N,1); 0-deg -> mean 0
    A_count = jnp.zeros((num_nodes, num_nodes), jnp.float32).at[dst, src].add(1.0)
    B_count = jnp.zeros((num_nodes, num_edges), jnp.float32).at[
        dst, jnp.arange(num_edges)].add(1.0)
    return A_count, B_count, inv_deg


def prepare_params(params, h_feats):
    """One-time weight prep: fuse [self|neigh] on the output axis, zero-pad to 128 lanes, bf16."""
    H = max(128, ((h_feats + 127) // 128) * 128)      # lane-dense hidden width
    pad_out = H - h_feats
    bf = jnp.bfloat16

    def pad_cols(w):
        return jnp.pad(w, ((0, 0), (0, pad_out)))

    # conv1: (Fn+Fe, 2H) = [W1_self | W1_neigh], single K=Fn+Fe projection in the kernel
    w1 = jnp.concatenate([pad_cols(params["w1_self"]),
                          pad_cols(params["w1_neigh"])], axis=1).astype(bf)
    b1 = pad_cols(params["b1"]).astype(jnp.float32)
    # conv2: pad input rows too (h1's padded columns are exactly zero: zero-pad weights/bias,
    # relu(0)=0), giving (H, 2H)
    w2s = jnp.pad(params["w2_self"], ((0, pad_out), (0, pad_out)))
    w2n = jnp.pad(params["w2_neigh"], ((0, pad_out), (0, pad_out)))
    w2 = jnp.concatenate([w2s, w2n], axis=1).astype(bf)
    b2 = pad_cols(params["b2"]).astype(jnp.float32)
    return {"w1": w1, "b1": b1, "w2": w2, "b2": b2, "H": H}


def reference_forward(xn, xe, A_count, B_count, inv_deg, params):
    """Pure-JAX f32 reference with explicit concat (matches DGL semantics)."""
    A_mean = A_count * inv_deg
    B_mean = B_count * inv_deg
    h_e = B_mean @ xe
    h0 = jnp.concatenate([xn, h_e], axis=1)
    h1 = jax.nn.relu(h0 @ params["w1_self"] + (A_mean @ h0) @ params["w1_neigh"] + params["b1"])
    h2 = h1 @ params["w2_self"] + (A_mean @ h1) @ params["w2_neigh"] + params["b2"]
    return h2


if __name__ == "__main__":
    N, E = 64, 256          # nodes, edges
    Fn, Fe = 16, 16         # node / edge feature dims
    in_feats = Fn + Fe      # SAGEConv1 input dim
    h_feats = 32            # hidden / output dim

    key = jax.random.PRNGKey(0)
    k = iter(jax.random.split(key, 12))

    feature_nodes = jax.random.normal(next(k), (N, Fn), jnp.float32)
    feature_edges = jax.random.normal(next(k), (E, Fe), jnp.float32)
    src = jax.random.randint(next(k), (E,), 0, N)
    dst = jax.random.randint(next(k), (E,), 0, N)

    def init_w(kk, fan_in, fan_out):
        # deterministic synthetic init; Linear weight stored as (in, out) so y = x @ W + b
        return jax.random.normal(kk, (fan_in, fan_out), jnp.float32) / jnp.sqrt(fan_in)

    params = {
        "w1_self": init_w(next(k), in_feats, h_feats),
        "w1_neigh": init_w(next(k), in_feats, h_feats),
        "b1": jax.random.normal(next(k), (1, h_feats), jnp.float32) * 0.01,
        "w2_self": init_w(next(k), h_feats, h_feats),
        "w2_neigh": init_w(next(k), h_feats, h_feats),
        "b2": jax.random.normal(next(k), (1, h_feats), jnp.float32) * 0.01,
    }

    # ---- one-time prep, kept off the per-call hot path ----
    A_count, B_count, inv_deg = build_graph_mats(src, dst, N, E)
    prepped = prepare_params(params, h_feats)
    H = prepped["H"]

    out_padded = graphsage_forward(
        feature_nodes, feature_edges, A_count, B_count, inv_deg,
        prepped["w1"], prepped["b1"], prepped["w2"], prepped["b2"], H=H)
    out_padded = jax.block_until_ready(out_padded)
    assert out_padded.shape == (N, H)

    # Slice off the lane padding at the consumer (outside the kernel hot path).
    out = out_padded[:, :h_feats]
    ref = reference_forward(feature_nodes, feature_edges, A_count, B_count, inv_deg, params)
    assert out.shape == (N, h_feats)
    # Exact integer aggregation operators + f32 inv_deg scaling allow a tighter tolerance than
    # before; remaining error is bf16 quantization of features/weights through two layers.
    assert jnp.allclose(out, ref, atol=5e-2, rtol=5e-2), float(jnp.max(jnp.abs(out - ref)))

    print("KERNEL_OK")
</pallas_src>

<mosaic_0001>
module attributes {stable_mosaic.version = 11 : i64} {
  func.func @graphsage_kernel(%arg0: memref<64x16xf32, #tpu.memory_space<vmem>>, %arg1: memref<256x16xf32, #tpu.memory_space<vmem>>, %arg2: memref<64x64xf32, #tpu.memory_space<vmem>>, %arg3: memref<64x256xf32, #tpu.memory_space<vmem>>, %arg4: memref<64x1xf32, #tpu.memory_space<vmem>>, %arg5: memref<32x256xbf16, #tpu.memory_space<vmem>>, %arg6: memref<1x128xf32, #tpu.memory_space<vmem>>, %arg7: memref<128x256xbf16, #tpu.memory_space<vmem>>, %arg8: memref<1x128xf32, #tpu.memory_space<vmem>>, %arg9: memref<64x128xf32, #tpu.memory_space<vmem>>) attributes {dimension_semantics = [], scalar_prefetch = 0 : i64, scratch_operands = 0 : i64, tpu.core_type = #tpu.core_type<tc>} {
    %c0 = arith.constant 0 : index
    %c0_0 = arith.constant 0 : index
    %0 = vector.load %arg0[%c0, %c0_0] : memref<64x16xf32, #tpu.memory_space<vmem>>, vector<64x16xf32>
    %c0_1 = arith.constant 0 : index
    %c0_2 = arith.constant 0 : index
    %1 = vector.load %arg1[%c0_1, %c0_2] : memref<256x16xf32, #tpu.memory_space<vmem>>, vector<256x16xf32>
    %c0_3 = arith.constant 0 : index
    %c0_4 = arith.constant 0 : index
    %2 = vector.load %arg2[%c0_3, %c0_4] : memref<64x64xf32, #tpu.memory_space<vmem>>, vector<64x64xf32>
    %c0_5 = arith.constant 0 : index
    %c0_6 = arith.constant 0 : index
    %3 = vector.load %arg3[%c0_5, %c0_6] : memref<64x256xf32, #tpu.memory_space<vmem>>, vector<64x256xf32>
    %c0_7 = arith.constant 0 : index
    %c0_8 = arith.constant 0 : index
    %4 = vector.load %arg4[%c0_7, %c0_8] : memref<64x1xf32, #tpu.memory_space<vmem>>, vector<64x1xf32>
    %cst = arith.constant dense<0.000000e+00> : vector<64x16xf32>
    %5 = tpu.matmul %3, %1, %cst {dimension_numbers = #tpu.dot_dimension_numbers<[1], [0], [0], [1], [0, 0, 1, 1], [], []>} : vector<64x256xf32>, vector<256x16xf32>, vector<64x16xf32> -> vector<64x16xf32>
    %6 = vector.broadcast %4 : vector<64x1xf32> to vector<64x16xf32>
    %7 = arith.mulf %5, %6 : vector<64x16xf32>
    %8 = tpu.concatenate %0, %7 in 1 : vector<64x16xf32>, vector<64x16xf32> -> vector<64x32xf32>
    %9 = arith.truncf %8 : vector<64x32xf32> to vector<64x32xbf16>
    %c0_9 = arith.constant 0 : index
    %c0_10 = arith.constant 0 : index
    %10 = vector.load %arg5[%c0_9, %c0_10] : memref<32x256xbf16, #tpu.memory_space<vmem>>, vector<32x256xbf16>
    %cst_11 = arith.constant dense<0.000000e+00> : vector<64x256xf32>
    %11 = tpu.matmul %9, %10, %cst_11 {dimension_numbers = #tpu.dot_dimension_numbers<[1], [0], [0], [1], [0, 0, 1, 1], [], []>} : vector<64x32xbf16>, vector<32x256xbf16>, vector<64x256xf32> -> vector<64x256xf32>
    %12 = vector.extract_strided_slice %11 {offsets = [0, 128], sizes = [64, 128], strides = [1, 1]} : vector<64x256xf32> to vector<64x128xf32>
    %cst_12 = arith.constant dense<0.000000e+00> : vector<64x128xf32>
    %13 = tpu.matmul %2, %12, %cst_12 {dimension_numbers = #tpu.dot_dimension_numbers<[1], [0], [0], [1], [0, 0, 1, 1], [], []>} : vector<64x64xf32>, vector<64x128xf32>, vector<64x128xf32> -> vector<64x128xf32>
    %14 = vector.broadcast %4 : vector<64x1xf32> to vector<64x128xf32>
    %15 = arith.mulf %13, %14 : vector<64x128xf32>
    %16 = vector.extract_strided_slice %11 {offsets = [0, 0], sizes = [64, 128], strides = [1, 1]} : vector<64x256xf32> to vector<64x128xf32>
    %17 = arith.addf %16, %15 : vector<64x128xf32>
    %c0_13 = arith.constant 0 : index
    %c0_14 = arith.constant 0 : index
    %18 = vector.load %arg6[%c0_13, %c0_14] : memref<1x128xf32, #tpu.memory_space<vmem>>, vector<1x128xf32>
    %19 = vector.broadcast %18 : vector<1x128xf32> to vector<64x128xf32>
    %20 = arith.addf %17, %19 : vector<64x128xf32>
    %cst_15 = arith.constant 0.000000e+00 : f32
    %21 = vector.broadcast %cst_15 : f32 to vector<64x128xf32>
    %22 = arith.maximumf %20, %21 : vector<64x128xf32>
    %23 = arith.truncf %22 : vector<64x128xf32> to vector<64x128xbf16>
    %c0_16 = arith.constant 0 : index
    %c0_17 = arith.constant 0 : index
    %24 = vector.load %arg7[%c0_16, %c0_17] : memref<128x256xbf16, #tpu.memory_space<vmem>>, vector<128x256xbf16>
    %cst_18 = arith.constant dense<0.000000e+00> : vector<64x256xf32>
    %25 = tpu.matmul %23, %24, %cst_18 {dimension_numbers = #tpu.dot_dimension_numbers<[1], [0], [0], [1], [0, 0, 1, 1], [], []>} : vector<64x128xbf16>, vector<128x256xbf16>, vector<64x256xf32> -> vector<64x256xf32>
    %26 = vector.extract_strided_slice %25 {offsets = [0, 128], sizes = [64, 128], strides = [1, 1]} : vector<64x256xf32> to vector<64x128xf32>
    %cst_19 = arith.constant dense<0.000000e+00> : vector<64x128xf32>
    %27 = tpu.matmul %2, %26, %cst_19 {dimension_numbers = #tpu.dot_dimension_numbers<[1], [0], [0], [1], [0, 0, 1, 1], [], []>} : vector<64x64xf32>, vector<64x128xf32>, vector<64x128xf32> -> vector<64x128xf32>
    %28 = vector.broadcast %4 : vector<64x1xf32> to vector<64x128xf32>
    %29 = arith.mulf %27, %28 : vector<64x128xf32>
    %30 = vector.extract_strided_slice %25 {offsets = [0, 0], sizes = [64, 128], strides = [1, 1]} : vector<64x256xf32> to vector<64x128xf32>
    %31 = arith.addf %30, %29 : vector<64x128xf32>
    %c0_20 = arith.constant 0 : index
    %c0_21 = arith.constant 0 : index
    %32 = vector.load %arg8[%c0_20, %c0_21] : memref<1x128xf32, #tpu.memory_space<vmem>>, vector<1x128xf32>
    %33 = vector.broadcast %32 : vector<1x128xf32> to vector<64x128xf32>
    %34 = arith.addf %31, %33 : vector<64x128xf32>
    %c0_22 = arith.constant 0 : index
    %c0_23 = arith.constant 0 : index
    %35 = vector.load %arg9[%c0_22, %c0_23] : memref<64x128xf32, #tpu.memory_space<vmem>>, vector<64x128xf32>
    tpu.vector_store %arg9[%c0_22, %c0_23], %34 {strides = array<i32>} : memref<64x128xf32, #tpu.memory_space<vmem>>, vector<64x128xf32>,
    return
  }
}

</mosaic_0001>

<llo_original>
// kernel: graphsage_forward.1
$region0: #{graphsage_forward.1}
  #allocation0 [shape = 'u32[]', space=smem, size = 0x4, offset = 0x4, fixed_abs, tag = 'smem constant byte address 0x4 - core index']
  #allocation1 [shape = 'u32[144,128]{1,0:T(1,128)}', space=vmem, size = 0x12000, scoped, tag = 'internal scratch']
  %s0 = inlined_call_operand.vmem [shape: f32[64,16], index: 0, kind: input, shape index: {}]
  %s1 = inlined_call_operand.vmem [shape: f32[256,16], index: 1, kind: input, shape index: {}]
  %s2 = inlined_call_operand.vmem [shape: f32[64,64], index: 2, kind: input, shape index: {}]
  %s3 = inlined_call_operand.vmem [shape: f32[64,256], index: 3, kind: input, shape index: {}]
  %s4 = inlined_call_operand.vmem [shape: f32[64,1], index: 4, kind: input, shape index: {}]
  %s5 = inlined_call_operand.vmem [shape: bf16[32,256], index: 5, kind: input, shape index: {}]
  %s6 = inlined_call_operand.vmem [shape: f32[1,128], index: 6, kind: input, shape index: {}]
  %s7 = inlined_call_operand.vmem [shape: bf16[128,256], index: 7, kind: input, shape index: {}]
  %s8 = inlined_call_operand.vmem [shape: f32[1,128], index: 8, kind: input, shape index: {}]
  %s9 = inlined_call_operand.hbm [shape: f32[64,128], index: 9, kind: output, shape index: {}]
  %s10 = sld [smem:[#allocation0]]
  $region46: #{graphsage_forward.1} parent=0
    _
  %s12 = ssub.s32 1, %s10
  %s13 = scalar_select 0, %s12, %s10
  $region1: #{graphsage_forward.1} parent=0
    #allocation2 [shape = 'u8[32768]{0}', space=vmem, size = 0x8000, scoped, tag = 'output window, operand 0, single buffered']
    #allocation3 [shape = 's32[1]{0}', space=sflag, size = 0x4, scoped, tag = 'scoped memory for graphsage_forward.1']
    %14 = vsyncpa [#allocation3], 0
    // Predicated region
    $region2: #{graphsage_forward.1} parent=1 // pred_check
      _
    $region3: #{graphsage_forward.1} parent=1 // pred_check_branch
      %16 = sbr.rel (0) target = $region5
    $region4: #{graphsage_forward.1} parent=1 // pred_region
      _
    $region5: #{graphsage_forward.1} parent=1 // pred_fallthru
      _
    // Predicated region
    $region6: #{graphsage_forward.1} parent=1 // pred_check
      _
    $region7: #{graphsage_forward.1} parent=1 // pred_check_branch
      %18 = sbr.rel (0) target = $region9
    $region8: #{graphsage_forward.1} parent=1 // pred_region
      _
    $region9: #{graphsage_forward.1} parent=1 // pred_fallthru
      _
    // Predicated region
    $region10: #{graphsage_forward.1} parent=1 // pred_check
      _
    $region11: #{graphsage_forward.1} parent=1 // pred_check_branch
      %20 = sbr.rel (0) target = $region13
    $region12: #{graphsage_forward.1} parent=1 // pred_region
      _
    $region13: #{graphsage_forward.1} parent=1 // pred_fallthru
      _
    // Predicated region
    $region14: #{graphsage_forward.1} parent=1 // pred_check
      _
    $region15: #{graphsage_forward.1} parent=1 // pred_check_branch
      %22 = sbr.rel (0) target = $region17
    $region16: #{graphsage_forward.1} parent=1 // pred_region
      _
    $region17: #{graphsage_forward.1} parent=1 // pred_fallthru
      _
    // Predicated region
    $region18: #{graphsage_forward.1} parent=1 // pred_check
      _
    $region19: #{graphsage_forward.1} parent=1 // pred_check_branch
      %24 = sbr.rel (0) target = $region21
    $region20: #{graphsage_forward.1} parent=1 // pred_region
      _
    $region21: #{graphsage_forward.1} parent=1 // pred_fallthru
      _
    // Predicated region
    $region22: #{graphsage_forward.1} parent=1 // pred_check
      _
    $region23: #{graphsage_forward.1} parent=1 // pred_check_branch
      %26 = sbr.rel (0) target = $region25
    $region24: #{graphsage_forward.1} parent=1 // pred_region
      _
    $region25: #{graphsage_forward.1} parent=1 // pred_fallthru
      _
    // Predicated region
    $region26: #{graphsage_forward.1} parent=1 // pred_check
      _
    $region27: #{graphsage_forward.1} parent=1 // pred_check_branch
      %28 = sbr.rel (0) target = $region29
    $region28: #{graphsage_forward.1} parent=1 // pred_region
      _
    $region29: #{graphsage_forward.1} parent=1 // pred_fallthru
      _
    // Predicated region
    $region30: #{graphsage_forward.1} parent=1 // pred_check
      _
    $region31: #{graphsage_forward.1} parent=1 // pred_check_branch
      %30 = sbr.rel (0) target = $region33
    $region32: #{graphsage_forward.1} parent=1 // pred_region
      _
    $region33: #{graphsage_forward.1} parent=1 // pred_fallthru
      _
    // Predicated region
    $region34: #{graphsage_forward.1} parent=1 // pred_check
      _
    $region35: #{graphsage_forward.1} parent=1 // pred_check_branch
      %32 = sbr.rel (0) target = $region37
    $region36: #{graphsage_forward.1} parent=1 // pred_region
      _
    $region37: #{graphsage_forward.1} parent=1 // pred_fallthru
      _
    %v34 = vld [vmem:[%s0] sm:$0xff]
    %v35 = vld [vmem:[%s0 + $0x8] sm:$0xff]
    %v36 = vld [vmem:[%s0 + $0x10] sm:$0xff]
    %v37 = vld [vmem:[%s0 + $0x18] sm:$0xff]
    %v38 = vld [vmem:[%s0 + $0x20] sm:$0xff]
    %v39 = vld [vmem:[%s0 + $0x28] sm:$0xff]
    %v40 = vld [vmem:[%s0 + $0x30] sm:$0xff]
    %v41 = vld [vmem:[%s0 + $0x38] sm:$0xff]
    %v42 = vld [vmem:[%s1] sm:$0xff]
    %v43 = vld [vmem:[%s1 + $0x8] sm:$0xff]
    %v44 = vld [vmem:[%s1 + $0x10] sm:$0xff]
    %v45 = vld [vmem:[%s1 + $0x18] sm:$0xff]
    %v46 = vld [vmem:[%s1 + $0x20] sm:$0xff]
    %v47 = vld [vmem:[%s1 + $0x28] sm:$0xff]
    %v48 = vld [vmem:[%s1 + $0x30] sm:$0xff]
    %v49 = vld [vmem:[%s1 + $0x38] sm:$0xff]
    %v50 = vld [vmem:[%s1 + $0x40] sm:$0xff]
    %v51 = vld [vmem:[%s1 + $0x48] sm:$0xff]
    %v52 = vld [vmem:[%s1 + $0x50] sm:$0xff]
    %v53 = vld [vmem:[%s1 + $0x58] sm:$0xff]
    %v54 = vld [vmem:[%s1 + $0x60] sm:$0xff]
    %v55 = vld [vmem:[%s1 + $0x68] sm:$0xff]
    %v56 = vld [vmem:[%s1 + $0x70] sm:$0xff]
    %v57 = vld [vmem:[%s1 + $0x78] sm:$0xff]
    %v58 = vld [vmem:[%s1 + $0x80] sm:$0xff]
    %v59 = vld [vmem:[%s1 + $0x88] sm:$0xff]
    %v60 = vld [vmem:[%s1 + $0x90] sm:$0xff]
    %v61 = vld [vmem:[%s1 + $0x98] sm:$0xff]
    %v62 = vld [vmem:[%s1 + $0xa0] sm:$0xff]
    %v63 = vld [vmem:[%s1 + $0xa8] sm:$0xff]
    %v64 = vld [vmem:[%s1 + $0xb0] sm:$0xff]
    %v65 = vld [vmem:[%s1 + $0xb8] sm:$0xff]
    %v66 = vld [vmem:[%s1 + $0xc0] sm:$0xff]
    %v67 = vld [vmem:[%s1 + $0xc8] sm:$0xff]
    %v68 = vld [vmem:[%s1 + $0xd0] sm:$0xff]
    %v69 = vld [vmem:[%s1 + $0xd8] sm:$0xff]
    %v70 = vld [vmem:[%s1 + $0xe0] sm:$0xff]
    %v71 = vld [vmem:[%s1 + $0xe8] sm:$0xff]
    %v72 = vld [vmem:[%s1 + $0xf0] sm:$0xff]
    %v73 = vld [vmem:[%s1 + $0xf8] sm:$0xff]
    %v74 = vld [vmem:[%s2] sm:$0xff]
    %v75 = vld [vmem:[%s2 + $0x8] sm:$0xff]
    %v76 = vld [vmem:[%s2 + $0x10] sm:$0xff]
    %v77 = vld [vmem:[%s2 + $0x18] sm:$0xff]
    %v78 = vld [vmem:[%s2 + $0x20] sm:$0xff]
    %v79 = vld [vmem:[%s2 + $0x28] sm:$0xff]
    %v80 = vld [vmem:[%s2 + $0x30] sm:$0xff]
    %v81 = vld [vmem:[%s2 + $0x38] sm:$0xff]
    %v82 = vld [vmem:[%s3] sm:$0xff]
    %v83 = vld [vmem:[%s3 + $0x8] sm:$0xff]
    %v84 = vld [vmem:[%s3 + $0x10] sm:$0xff]
    %v85 = vld [vmem:[%s3 + $0x18] sm:$0xff]
    %v86 = vld [vmem:[%s3 + $0x20] sm:$0xff]
    %v87 = vld [vmem:[%s3 + $0x28] sm:$0xff]
    %v88 = vld [vmem:[%s3 + $0x30] sm:$0xff]
    %v89 = vld [vmem:[%s3 + $0x38] sm:$0xff]
    %v90 = vld [vmem:[%s3 + $0x40] sm:$0xff]
    %v91 = vld [vmem:[%s3 + $0x48] sm:$0xff]
    %v92 = vld [vmem:[%s3 + $0x50] sm:$0xff]
    %v93 = vld [vmem:[%s3 + $0x58] sm:$0xff]
    %v94 = vld [vmem:[%s3 + $0x60] sm:$0xff]
    %v95 = vld [vmem:[%s3 + $0x68] sm:$0xff]
    %v96 = vld [vmem:[%s3 + $0x70] sm:$0xff]
    %v97 = vld [vmem:[%s3 + $0x78] sm:$0xff]
    %v98 = vld [vmem:[%s4] sm:$0xff]
    %v99 = vld [vmem:[%s4 + $0x8] sm:$0xff]
    %v100 = vld [vmem:[%s4 + $0x10] sm:$0xff]
    %v101 = vld [vmem:[%s4 + $0x18] sm:$0xff]
    %v102 = vld [vmem:[%s4 + $0x20] sm:$0xff]
    %v103 = vld [vmem:[%s4 + $0x28] sm:$0xff]
    %v104 = vld [vmem:[%s4 + $0x30] sm:$0xff]
    %v105 = vld [vmem:[%s4 + $0x38] sm:$0xff]
    %106 = vmatprep.subr.mxu0 0.0
    %107 = vmatpush1.msra.mxu0 %v42
    %108 = vmatprep.subr.mxu0 0.0
    %109 = vmatpush1.msra.mxu0 %v43
    %110 = vmatprep.subr.mxu0 0.0
    %111 = vmatpush1.msra.mxu0 %v44
    %112 = vmatprep.subr.mxu0 0.0
    %113 = vmatpush1.msra.mxu0 %v45
    %114 = vmatprep.subr.mxu0 0.0
    %115 = vmatpush1.msra.mxu0 %v46
    %116 = vmatprep.subr.mxu0 0.0
    %117 = vmatpush1.msra.mxu0 %v47
    %118 = vmatprep.subr.mxu0 0.0
    %119 = vmatpush1.msra.mxu0 %v48
    %120 = vmatprep.subr.mxu0 0.0
    %121 = vmatpush1.msra.mxu0 %v49
    %122 = vmatprep.subr.mxu0 0.0
    %123 = vmatpush1.msra.mxu0 %v50
    %124 = vmatprep.subr.mxu0 0.0
    %125 = vmatpush1.msra.mxu0 %v51
    %126 = vmatprep.subr.mxu0 0.0
    %127 = vmatpush1.msra.mxu0 %v52
    %128 = vmatprep.subr.mxu0 0.0
    %129 = vmatpush1.msra.mxu0 %v53
    %130 = vmatprep.subr.mxu0 0.0
    %131 = vmatpush1.msra.mxu0 %v54
    %132 = vmatprep.subr.mxu0 0.0
    %133 = vmatpush1.msra.mxu0 %v55
    %134 = vmatprep.subr.mxu0 0.0
    %135 = vmatpush1.msra.mxu0 %v56
    %136 = vmatprep.subr.mxu0 0.0
    %137 = vmatpush1.msra.mxu0 %v57
    %138 = vmatprep.subr.mxu0 0.0
    %139 = vmatpush1.msra.mxu0 %v58
    %140 = vmatprep.subr.mxu0 0.0
    %141 = vmatpush1.msra.mxu0 %v59
    %142 = vmatprep.subr.mxu0 0.0
    %143 = vmatpush1.msra.mxu0 %v60
    %144 = vmatprep.subr.mxu0 0.0
    %145 = vmatpush1.msra.mxu0 %v61
    %146 = vmatprep.subr.mxu0 0.0
    %147 = vmatpush1.msra.mxu0 %v62
    %148 = vmatprep.subr.mxu0 0.0
    %149 = vmatpush1.msra.mxu0 %v63
    %150 = vmatprep.subr.mxu0 0.0
    %151 = vmatpush1.msra.mxu0 %v64
    %152 = vmatprep.subr.mxu0 0.0
    %153 = vmatpush1.msra.mxu0 %v65
    %154 = vmatprep.subr.mxu0 0.0
    %155 = vmatpush1.msra.mxu0 %v66
    %156 = vmatprep.subr.mxu0 0.0
    %157 = vmatpush1.msra.mxu0 %v67
    %158 = vmatprep.subr.mxu0 0.0
    %159 = vmatpush1.msra.mxu0 %v68
    %160 = vmatprep.subr.mxu0 0.0
    %161 = vmatpush1.msra.mxu0 %v69
    %162 = vmatprep.subr.mxu0 0.0
    %163 = vmatpush1.msra.mxu0 %v70
    %164 = vmatprep.subr.mxu0 0.0
    %165 = vmatpush1.msra.mxu0 %v71
    %166 = vmatprep.subr.mxu0 0.0
    %167 = vmatpush1.msra.mxu0 %v72
    %168 = vmatprep.subr.mxu0 0.0
    %169 = vmatpush1.msra.mxu0 %v73
    %170 = vmatprep.mubr.f32.mxu0 %v83
    %171 = vmatmul.mubr.f32.gmra.mrb[0].mxu0 %v82
    %v172 = vpop.f32.mrb[0].mxu0
    %v173 = vadd.f32 0.0, %v172
    %v174 = vpop.f32.mrb[0].mxu0
    %175 = vmatprep.mubr.f32.mxu0 %v85
    %176 = vmatmul.mubr.f32.gmra.mrb[0].mxu0 %v84
    %v177 = vpop.f32.mrb[0].mxu0
    %v178 = vadd.f32 0.0, %v177
    %v179 = vpop.f32.mrb[0].mxu0
    %180 = vmatprep.mubr.f32.mxu0 %v87
    %181 = vmatmul.mubr.f32.gmra.mrb[0].mxu0 %v86
    %v182 = vpop.f32.mrb[0].mxu0
    %v183 = vadd.f32 0.0, %v182
    %v184 = vpop.f32.mrb[0].mxu0
    %185 = vmatprep.mubr.f32.mxu0 %v89
    %186 = vmatmul.mubr.f32.gmra.mrb[0].mxu0 %v88
    %v187 = vpop.f32.mrb[0].mxu0
    %v188 = vadd.f32 0.0, %v187
    %v189 = vpop.f32.mrb[0].mxu0
    %190 = vmatprep.mubr.f32.mxu0 %v91
    %191 = vmatmul.mubr.f32.gmra.mrb[0].mxu0 %v90
    %v192 = vpop.f32.mrb[0].mxu0
    %v193 = vadd.f32 0.0, %v192
    %v194 = vpop.f32.mrb[0].mxu0
    %195 = vmatprep.mubr.f32.mxu0 %v93
    %196 = vmatmul.mubr.f32.gmra.mrb[0].mxu0 %v92
    %v197 = vpop.f32.mrb[0].mxu0
    %v198 = vadd.f32 0.0, %v197
    %v199 = vpop.f32.mrb[0].mxu0
    %200 = vmatprep.mubr.f32.mxu0 %v95
    %201 = vmatmul.mubr.f32.gmra.mrb[0].mxu0 %v94
    %v202 = vpop.f32.mrb[0].mxu0
    %v203 = vadd.f32 0.0, %v202
    %v204 = vpop.f32.mrb[0].mxu0
    %205 = vmatprep.mubr.f32.mxu0 %v97
    %206 = vmatmul.mubr.f32.gmra.mrb[0].mxu0 %v96
    %v207 = vpop.f32.mrb[0].mxu0
    %v208 = vadd.f32 0.0, %v207
    %v209 = vpop.f32.mrb[0].mxu0
    %210 = vdwg.mxu0
    %212 = vset.pattern.permute.xlu0 0
    %213 = vperm.xlu0 %212, %v98
    %v214 = vpop.permute.xlu0 %213
    %217 = vset.pattern.permute.xlu0 0
    %218 = vperm.xlu0 %217, %v99
    %v219 = vpop.permute.xlu0 %218
    %222 = vset.pattern.permute.xlu0 0
    %223 = vperm.xlu0 %222, %v100
    %v224 = vpop.permute.xlu0 %223
    %227 = vset.pattern.permute.xlu0 0
    %228 = vperm.xlu0 %227, %v101
    %v229 = vpop.permute.xlu0 %228
    %232 = vset.pattern.permute.xlu0 0
    %233 = vperm.xlu0 %232, %v102
    %v234 = vpop.permute.xlu0 %233
    %237 = vset.pattern.permute.xlu0 0
    %238 = vperm.xlu0 %237, %v103
    %v239 = vpop.permute.xlu0 %238
    %242 = vset.pattern.permute.xlu0 0
    %243 = vperm.xlu0 %242, %v104
    %v244 = vpop.permute.xlu0 %243
    %247 = vset.pattern.permute.xlu0 0
    %248 = vperm.xlu0 %247, %v105
    %v249 = vpop.permute.xlu0 %248
    %v251 = vmul.f32 %v173, %v214
    %v252 = vmul.f32 %v178, %v219
    %v253 = vmul.f32 %v183, %v224
    %v254 = vmul.f32 %v188, %v229
    %v255 = vmul.f32 %v193, %v234
    %v256 = vmul.f32 %v198, %v239
    %v257 = vmul.f32 %v203, %v244
    %v258 = vmul.f32 %v208, %v249
    %267 = vrot.lane.b32.xlu0 %v251, 16
    %v268 = vpop.permute.xlu0 %267
    %269 = vrot.lane.b32.xlu0 %v252, 16
    %v270 = vpop.permute.xlu0 %269
    %271 = vrot.lane.b32.xlu0 %v253, 16
    %v272 = vpop.permute.xlu0 %271
    %273 = vrot.lane.b32.xlu0 %v254, 16
    %v274 = vpop.permute.xlu0 %273
    %275 = vrot.lane.b32.xlu0 %v255, 16
    %v276 = vpop.permute.xlu0 %275
    %277 = vrot.lane.b32.xlu0 %v256, 16
    %v278 = vpop.permute.xlu0 %277
    %279 = vrot.lane.b32.xlu0 %v257, 16
    %v280 = vpop.permute.xlu0 %279
    %281 = vrot.lane.b32.xlu0 %v258, 16
    %v282 = vpop.permute.xlu0 %281
    %vm291 = vcmask 130048
    %v292 = vsel %vm291, %v34, %v268
    %v293 = vsel %vm291, %v35, %v270
    %v294 = vsel %vm291, %v36, %v272
    %v295 = vsel %vm291, %v37, %v274
    %v296 = vsel %vm291, %v38, %v276
    %v297 = vsel %vm291, %v39, %v278
    %v298 = vsel %vm291, %v40, %v280
    %v299 = vsel %vm291, %v41, %v282
    %v300 = vpack.c.bf16 %v293, %v292
    %v301 = vpack.c.bf16 %v295, %v294
    %v302 = vpack.c.bf16 %v297, %v296
    %v303 = vpack.c.bf16 %v299, %v298
    %v304 = vld [vmem:[%s5] sm:$0xff]
    %v305 = vld [vmem:[%s5 + $0x8] sm:$0xff]
    %v306 = vld [vmem:[%s5 + $0x10] sm:$0xff]
    %v307 = vld [vmem:[%s5 + $0x18] sm:$0xff]
    %v312 = vunpack.c.l.b16 %v304
    %v313 = vunpack.c.h.b16 %v304
    %v314 = vunpack.c.l.b16 %v305
    %v315 = vunpack.c.h.b16 %v305
    %v316 = vunpack.c.l.b16 %v306
    %v317 = vunpack.c.h.b16 %v306
    %v318 = vunpack.c.l.b16 %v307
    %v319 = vunpack.c.h.b16 %v307
    %v320 = vpack.c.b16 %v314, %v312
    %v321 = vpack.c.b16 %v315, %v313
    %v322 = vpack.c.b16 %v318, %v316
    %v323 = vpack.c.b16 %v319, %v317
    %vm328 = vcmask 261120
    %v330 = vsel %vm328, %v300, 0
    %v333 = vsel %vm328, %v301, 0
    %v336 = vsel %vm328, %v302, 0
    %v339 = vsel %vm328, %v303, 0
    %341 = vmatprep.subr.bf16.mxu0 %v321
    %342 = vmatpush1.bf16.msra.mxu0 %v320
    %343 = vmatprep.subr.bf16.mxu0 %v323
    %344 = vmatpush1.bf16.msra.mxu0 %v322
    %345 = vmatprep.subr.bf16.mxu0 0
    %346 = vmatpush1.bf16.msra.mxu0 0
    %347 = vmatprep.subr.bf16.mxu0 0
    %348 = vmatpush1.bf16.msra.mxu0 0
    %349 = vmatprep.subr.bf16.mxu0 0
    %350 = vmatpush1.bf16.msra.mxu0 0
    %351 = vmatprep.subr.bf16.mxu0 0
    %352 = vmatpush1.bf16.msra.mxu0 0
    %353 = vmatprep.subr.bf16.mxu0 0
    %354 = vmatpush1.bf16.msra.mxu0 0
    %355 = vmatprep.subr.bf16.mxu0 0
    %356 = vmatpush1.bf16.msra.mxu0 0
    %357 = vmatprep.subr.bf16.mxu0 0
    %358 = vmatpush1.bf16.msra.mxu0 0
    %359 = vmatprep.subr.bf16.mxu0 0
    %360 = vmatpush1.bf16.msra.mxu0 0
    %361 = vmatprep.subr.bf16.mxu0 0
    %362 = vmatpush1.bf16.msra.mxu0 0
    %363 = vmatprep.subr.bf16.mxu0 0
    %364 = vmatpush1.bf16.msra.mxu0 0
    %365 = vmatprep.subr.bf16.mxu0 0
    %366 = vmatpush1.bf16.msra.mxu0 0
    %367 = vmatprep.subr.bf16.mxu0 0
    %368 = vmatpush1.bf16.msra.mxu0 0
    %369 = vmatprep.subr.bf16.mxu0 0
    %370 = vmatpush1.bf16.msra.mxu0 0
    %371 = vmatprep.subr.bf16.mxu0 0
    %372 = vmatpush1.bf16.msra.mxu0 0
    %373 = vmatprep.mubr.bf16.mxu0 0
    %374 = vmatmul.mubr.bf16.gmra.mrb[0].mxu0 %v330
    %v375 = vpop.f32.mrb[0].mxu0
    %v376 = vadd.f32 0.0, %v375
    %v377 = vpop.f32.mrb[0].mxu0
    %v378 = vadd.f32 0.0, %v377
    %v379 = vpop.f32.mrb[0].mxu0
    %v380 = vadd.f32 0.0, %v379
    %v381 = vpop.f32.mrb[0].mxu0
    %v382 = vadd.f32 0.0, %v381
    %383 = vmatprep.mubr.bf16.mxu0 0
    %384 = vmatmul.mubr.bf16.gmra.mrb[0].mxu0 %v333
    %v385 = vpop.f32.mrb[0].mxu0
    %v386 = vadd.f32 0.0, %v385
    %v387 = vpop.f32.mrb[0].mxu0
    %v388 = vadd.f32 0.0, %v387
    %v389 = vpop.f32.mrb[0].mxu0
    %v390 = vadd.f32 0.0, %v389
    %v391 = vpop.f32.mrb[0].mxu0
    %v392 = vadd.f32 0.0, %v391
    %393 = vmatprep.mubr.bf16.mxu0 0
    %394 = vmatmul.mubr.bf16.gmra.mrb[0].mxu0 %v336
    %v395 = vpop.f32.mrb[0].mxu0
    %v396 = vadd.f32 0.0, %v395
    %v397 = vpop.f32.mrb[0].mxu0
    %v398 = vadd.f32 0.0, %v397
    %v399 = vpop.f32.mrb[0].mxu0
    %v400 = vadd.f32 0.0, %v399
    %v401 = vpop.f32.mrb[0].mxu0
    %v402 = vadd.f32 0.0, %v401
    %403 = vmatprep.mubr.bf16.mxu0 0
    %404 = vmatmul.mubr.bf16.gmra.mrb[0].mxu0 %v339
    %v405 = vpop.f32.mrb[0].mxu0
    %v406 = vadd.f32 0.0, %v405
    %v407 = vpop.f32.mrb[0].mxu0
    %v408 = vadd.f32 0.0, %v407
    %v409 = vpop.f32.mrb[0].mxu0
    %v410 = vadd.f32 0.0, %v409
    %v411 = vpop.f32.mrb[0].mxu0
    %v412 = vadd.f32 0.0, %v411
    %413 = vdwg.mxu0
    %vm414 = vcmask 523264
    %v416 = vsel %vm414, %v74, 0
    %v419 = vsel %vm414, %v75, 0
    %v422 = vsel %vm414, %v76, 0
    %v425 = vsel %vm414, %v77, 0
    %v428 = vsel %vm414, %v78, 0
    %v431 = vsel %vm414, %v79, 0
    %v434 = vsel %vm414, %v80, 0
    %v437 = vsel %vm414, %v81, 0
    %439 = vmatprep.subr.mxu0 0.0
    %440 = vmatpush1.msra.mxu0 %v378
    %441 = vmatprep.subr.mxu0 0.0
    %442 = vmatpush1.msra.mxu0 %v382
    %443 = vmatprep.subr.mxu0 0.0
    %444 = vmatpush1.msra.mxu0 %v388
    %445 = vmatprep.subr.mxu0 0.0
    %446 = vmatpush1.msra.mxu0 %v392
    %447 = vmatprep.subr.mxu0 0.0
    %448 = vmatpush1.msra.mxu0 %v398
    %449 = vmatprep.subr.mxu0 0.0
    %450 = vmatpush1.msra.mxu0 %v402
    %451 = vmatprep.subr.mxu0 0.0
    %452 = vmatpush1.msra.mxu0 %v408
    %453 = vmatprep.subr.mxu0 0.0
    %454 = vmatpush1.msra.mxu0 %v412
    %455 = vmatprep.subr.mxu0 0.0
    %456 = vmatpush1.msra.mxu0 0.0
    %457 = vmatprep.subr.mxu0 0.0
    %458 = vmatpush1.msra.mxu0 0.0
    %459 = vmatprep.subr.mxu0 0.0
    %460 = vmatpush1.msra.mxu0 0.0
    %461 = vmatprep.subr.mxu0 0.0
    %462 = vmatpush1.msra.mxu0 0.0
    %463 = vmatprep.subr.mxu0 0.0
    %464 = vmatpush1.msra.mxu0 0.0
    %465 = vmatprep.subr.mxu0 0.0
    %466 = vmatpush1.msra.mxu0 0.0
    %467 = vmatprep.subr.mxu0 0.0
    %468 = vmatpush1.msra.mxu0 0.0
    %469 = vmatprep.subr.mxu0 0.0
    %470 = vmatpush1.msra.mxu0 0.0
    %471 = vmatprep.subr.mxu0 0.0
    %472 = vmatpush1.msra.mxu0 0.0
    %473 = vmatprep.subr.mxu0 0.0
    %474 = vmatpush1.msra.mxu0 0.0
    %475 = vmatprep.subr.mxu0 0.0
    %476 = vmatpush1.msra.mxu0 0.0
    %477 = vmatprep.subr.mxu0 0.0
    %478 = vmatpush1.msra.mxu0 0.0
    %479 = vmatprep.subr.mxu0 0.0
    %480 = vmatpush1.msra.mxu0 0.0
    %481 = vmatprep.subr.mxu0 0.0
    %482 = vmatpush1.msra.mxu0 0.0
    %483 = vmatprep.subr.mxu0 0.0
    %484 = vmatpush1.msra.mxu0 0.0
    %485 = vmatprep.subr.mxu0 0.0
    %486 = vmatpush1.msra.mxu0 0.0
    %487 = vmatprep.subr.mxu0 0.0
    %488 = vmatpush1.msra.mxu0 0.0
    %489 = vmatprep.subr.mxu0 0.0
    %490 = vmatpush1.msra.mxu0 0.0
    %491 = vmatprep.subr.mxu0 0.0
    %492 = vmatpush1.msra.mxu0 0.0
    %493 = vmatprep.subr.mxu0 0.0
    %494 = vmatpush1.msra.mxu0 0.0
    %495 = vmatprep.subr.mxu0 0.0
    %496 = vmatpush1.msra.mxu0 0.0
    %497 = vmatprep.subr.mxu0 0.0
    %498 = vmatpush1.msra.mxu0 0.0
    %499 = vmatprep.subr.mxu0 0.0
    %500 = vmatpush1.msra.mxu0 0.0
    %501 = vmatprep.subr.mxu0 0.0
    %502 = vmatpush1.msra.mxu0 0.0
    %503 = vmatprep.mubr.f32.mxu0 0.0
    %504 = vmatmul.mubr.f32.gmra.mrb[0].mxu0 %v416
    %v505 = vpop.f32.mrb[0].mxu0
    %v506 = vadd.f32 0.0, %v505
    %v507 = vpop.f32.mrb[0].mxu0
    %508 = vmatprep.mubr.f32.mxu0 0.0
    %509 = vmatmul.mubr.f32.gmra.mrb[0].mxu0 %v419
    %v510 = vpop.f32.mrb[0].mxu0
    %v511 = vadd.f32 0.0, %v510
    %v512 = vpop.f32.mrb[0].mxu0
    %513 = vmatprep.mubr.f32.mxu0 0.0
    %514 = vmatmul.mubr.f32.gmra.mrb[0].mxu0 %v422
    %v515 = vpop.f32.mrb[0].mxu0
    %v516 = vadd.f32 0.0, %v515
    %v517 = vpop.f32.mrb[0].mxu0
    %518 = vmatprep.mubr.f32.mxu0 0.0
    %519 = vmatmul.mubr.f32.gmra.mrb[0].mxu0 %v425
    %v520 = vpop.f32.mrb[0].mxu0
    %v521 = vadd.f32 0.0, %v520
    %v522 = vpop.f32.mrb[0].mxu0
    %523 = vmatprep.mubr.f32.mxu0 0.0
    %524 = vmatmul.mubr.f32.gmra.mrb[0].mxu0 %v428
    %v525 = vpop.f32.mrb[0].mxu0
    %v526 = vadd.f32 0.0, %v525
    %v527 = vpop.f32.mrb[0].mxu0
    %528 = vmatprep.mubr.f32.mxu0 0.0
    %529 = vmatmul.mubr.f32.gmra.mrb[0].mxu0 %v431
    %v530 = vpop.f32.mrb[0].mxu0
    %v531 = vadd.f32 0.0, %v530
    %v532 = vpop.f32.mrb[0].mxu0
    %533 = vmatprep.mubr.f32.mxu0 0.0
    %534 = vmatmul.mubr.f32.gmra.mrb[0].mxu0 %v434
    %v535 = vpop.f32.mrb[0].mxu0
    %v536 = vadd.f32 0.0, %v535
    %v537 = vpop.f32.mrb[0].mxu0
    %538 = vmatprep.mubr.f32.mxu0 0.0
    %539 = vmatmul.mubr.f32.gmra.mrb[0].mxu0 %v437
    %v540 = vpop.f32.mrb[0].mxu0
    %v541 = vadd.f32 0.0, %v540
    %v542 = vpop.f32.mrb[0].mxu0
    %543 = vdwg.mxu0
    %v544 = vmul.f32 %v506, %v214
    %v545 = vmul.f32 %v511, %v219
    %v546 = vmul.f32 %v516, %v224
    %v547 = vmul.f32 %v521, %v229
    %v548 = vmul.f32 %v526, %v234
    %v549 = vmul.f32 %v531, %v239
    %v550 = vmul.f32 %v536, %v244
    %v551 = vmul.f32 %v541, %v249
    %v552 = vadd.f32 %v376, %v544
    %v553 = vadd.f32 %v380, %v545
    %v554 = vadd.f32 %v386, %v546
    %v555 = vadd.f32 %v390, %v547
    %v556 = vadd.f32 %v396, %v548
    %v557 = vadd.f32 %v400, %v549
    %v558 = vadd.f32 %v406, %v550
    %v559 = vadd.f32 %v410, %v551
    %v560 = vld [vmem:[%s6] sm:$0x1]
    %v562 = vlaneseq
    %v563 = vshrl.u32 %v562, 7
    %v564 = vsub.s32 0, %v563
    %v565 = vrot.slane %v560, %v564
    %v567 = vadd.f32 %v552, %v565
    %v568 = vadd.f32 %v553, %v565
    %v569 = vadd.f32 %v554, %v565
    %v570 = vadd.f32 %v555, %v565
    %v571 = vadd.f32 %v556, %v565
    %v572 = vadd.f32 %v557, %v565
    %v573 = vadd.f32 %v558, %v565
    %v574 = vadd.f32 %v559, %v565
    %v575 = vmax.f32 %v567, 0.0
    %v576 = vmax.f32 %v568, 0.0
    %v577 = vmax.f32 %v569, 0.0
    %v578 = vmax.f32 %v570, 0.0
    %v579 = vmax.f32 %v571, 0.0
    %v580 = vmax.f32 %v572, 0.0
    %v581 = vmax.f32 %v573, 0.0
    %v582 = vmax.f32 %v574, 0.0
    %v583 = vpack.c.bf16 %v576, %v575
    %v584 = vpack.c.bf16 %v578, %v577
    %v585 = vpack.c.bf16 %v580, %v579
    %v586 = vpack.c.bf16 %v582, %v581
    %v587 = vld [vmem:[%s7] sm:$0xff]
    %v588 = vld [vmem:[%s7 + $0x8] sm:$0xff]
    %v589 = vld [vmem:[%s7 + $0x10] sm:$0xff]
    %v590 = vld [vmem:[%s7 + $0x18] sm:$0xff]
    %v591 = vld [vmem:[%s7 + $0x20] sm:$0xff]
    %v592 = vld [vmem:[%s7 + $0x28] sm:$0xff]
    %v593 = vld [vmem:[%s7 + $0x30] sm:$0xff]
    %v594 = vld [vmem:[%s7 + $0x38] sm:$0xff]
    %v595 = vld [vmem:[%s7 + $0x40] sm:$0xff]
    %v596 = vld [vmem:[%s7 + $0x48] sm:$0xff]
    %v597 = vld [vmem:[%s7 + $0x50] sm:$0xff]
    %v598 = vld [vmem:[%s7 + $0x58] sm:$0xff]
    %v599 = vld [vmem:[%s7 + $0x60] sm:$0xff]
    %v600 = vld [vmem:[%s7 + $0x68] sm:$0xff]
    %v601 = vld [vmem:[%s7 + $0x70] sm:$0xff]
    %v602 = vld [vmem:[%s7 + $0x78] sm:$0xff]
    %v619 = vunpack.c.l.b16 %v587
    %v620 = vunpack.c.h.b16 %v587
    %v621 = vunpack.c.l.b16 %v588
    %v622 = vunpack.c.h.b16 %v588
    %v623 = vunpack.c.l.b16 %v589
    %v624 = vunpack.c.h.b16 %v589
    %v625 = vunpack.c.l.b16 %v590
    %v626 = vunpack.c.h.b16 %v590
    %v627 = vunpack.c.l.b16 %v591
    %v628 = vunpack.c.h.b16 %v591
    %v629 = vunpack.c.l.b16 %v592
    %v630 = vunpack.c.h.b16 %v592
    %v631 = vunpack.c.l.b16 %v593
    %v632 = vunpack.c.h.b16 %v593
    %v633 = vunpack.c.l.b16 %v594
    %v634 = vunpack.c.h.b16 %v594
    %v635 = vunpack.c.l.b16 %v595
    %v636 = vunpack.c.h.b16 %v595
    %v637 = vunpack.c.l.b16 %v596
    %v638 = vunpack.c.h.b16 %v596
    %v639 = vunpack.c.l.b16 %v597
    %v640 = vunpack.c.h.b16 %v597
    %v641 = vunpack.c.l.b16 %v598
    %v642 = vunpack.c.h.b16 %v598
    %v643 = vunpack.c.l.b16 %v599
    %v644 = vunpack.c.h.b16 %v599
    %v645 = vunpack.c.l.b16 %v600
    %v646 = vunpack.c.h.b16 %v600
    %v647 = vunpack.c.l.b16 %v601
    %v648 = vunpack.c.h.b16 %v601
    %v649 = vunpack.c.l.b16 %v602
    %v650 = vunpack.c.h.b16 %v602
    %v651 = vpack.c.b16 %v621, %v619
    %v652 = vpack.c.b16 %v622, %v620
    %v653 = vpack.c.b16 %v625, %v623
    %v654 = vpack.c.b16 %v626, %v624
    %v655 = vpack.c.b16 %v629, %v627
    %v656 = vpack.c.b16 %v630, %v628
    %v657 = vpack.c.b16 %v633, %v631
    %v658 = vpack.c.b16 %v634, %v632
    %v659 = vpack.c.b16 %v637, %v635
    %v660 = vpack.c.b16 %v638, %v636
    %v661 = vpack.c.b16 %v641, %v639
    %v662 = vpack.c.b16 %v642, %v640
    %v663 = vpack.c.b16 %v645, %v643
    %v664 = vpack.c.b16 %v646, %v644
    %v665 = vpack.c.b16 %v649, %v647
    %v666 = vpack.c.b16 %v650, %v648
    %683 = vmatprep.subr.bf16.mxu0 %v652
    %684 = vmatpush1.bf16.msra.mxu0 %v651
    %685 = vmatprep.subr.bf16.mxu0 %v654
    %686 = vmatpush1.bf16.msra.mxu0 %v653
    %687 = vmatprep.subr.bf16.mxu0 %v656
    %688 = vmatpush1.bf16.msra.mxu0 %v655
    %689 = vmatprep.subr.bf16.mxu0 %v658
    %690 = vmatpush1.bf16.msra.mxu0 %v657
    %691 = vmatprep.subr.bf16.mxu0 %v660
    %692 = vmatpush1.bf16.msra.mxu0 %v659
    %693 = vmatprep.subr.bf16.mxu0 %v662
    %694 = vmatpush1.bf16.msra.mxu0 %v661
    %695 = vmatprep.subr.bf16.mxu0 %v664
    %696 = vmatpush1.bf16.msra.mxu0 %v663
    %697 = vmatprep.subr.bf16.mxu0 %v666
    %698 = vmatpush1.bf16.msra.mxu0 %v665
    %699 = vmatprep.subr.bf16.mxu0 0
    %700 = vmatpush1.bf16.msra.mxu0 0
    %701 = vmatprep.subr.bf16.mxu0 0
    %702 = vmatpush1.bf16.msra.mxu0 0
    %703 = vmatprep.subr.bf16.mxu0 0
    %704 = vmatpush1.bf16.msra.mxu0 0
    %705 = vmatprep.subr.bf16.mxu0 0
    %706 = vmatpush1.bf16.msra.mxu0 0
    %707 = vmatprep.subr.bf16.mxu0 0
    %708 = vmatpush1.bf16.msra.mxu0 0
    %709 = vmatprep.subr.bf16.mxu0 0
    %710 = vmatpush1.bf16.msra.mxu0 0
    %711 = vmatprep.subr.bf16.mxu0 0
    %712 = vmatpush1.bf16.msra.mxu0 0
    %713 = vmatprep.subr.bf16.mxu0 0
    %714 = vmatpush1.bf16.msra.mxu0 0
    %715 = vmatprep.mubr.bf16.mxu0 0
    %716 = vmatmul.mubr.bf16.gmra.mrb[0].mxu0 %v583
    %v717 = vpop.f32.mrb[0].mxu0
    %v718 = vadd.f32 0.0, %v717
    %v719 = vpop.f32.mrb[0].mxu0
    %v720 = vadd.f32 0.0, %v719
    %v721 = vpop.f32.mrb[0].mxu0
    %v722 = vadd.f32 0.0, %v721
    %v723 = vpop.f32.mrb[0].mxu0
    %v724 = vadd.f32 0.0, %v723
    %725 = vmatprep.mubr.bf16.mxu0 0
    %726 = vmatmul.mubr.bf16.gmra.mrb[0].mxu0 %v584
    %v727 = vpop.f32.mrb[0].mxu0
    %v728 = vadd.f32 0.0, %v727
    %v729 = vpop.f32.mrb[0].mxu0
    %v730 = vadd.f32 0.0, %v729
    %v731 = vpop.f32.mrb[0].mxu0
    %v732 = vadd.f32 0.0, %v731
    %v733 = vpop.f32.mrb[0].mxu0
    %v734 = vadd.f32 0.0, %v733
    %735 = vmatprep.mubr.bf16.mxu0 0
    %736 = vmatmul.mubr.bf16.gmra.mrb[0].mxu0 %v585
    %v737 = vpop.f32.mrb[0].mxu0
    %v738 = vadd.f32 0.0, %v737
    %v739 = vpop.f32.mrb[0].mxu0
    %v740 = vadd.f32 0.0, %v739
    %v741 = vpop.f32.mrb[0].mxu0
    %v742 = vadd.f32 0.0, %v741
    %v743 = vpop.f32.mrb[0].mxu0
    %v744 = vadd.f32 0.0, %v743
    %745 = vmatprep.mubr.bf16.mxu0 0
    %746 = vmatmul.mubr.bf16.gmra.mrb[0].mxu0 %v586
    %v747 = vpop.f32.mrb[0].mxu0
    %v748 = vadd.f32 0.0, %v747
    %v749 = vpop.f32.mrb[0].mxu0
    %v750 = vadd.f32 0.0, %v749
    %v751 = vpop.f32.mrb[0].mxu0
    %v752 = vadd.f32 0.0, %v751
    %v753 = vpop.f32.mrb[0].mxu0
    %v754 = vadd.f32 0.0, %v753
    %755 = vdwg.mxu0
    %756 = vmatprep.subr.mxu0 0.0
    %757 = vmatpush1.msra.mxu0 %v720
    %758 = vmatprep.subr.mxu0 0.0
    %759 = vmatpush1.msra.mxu0 %v724
    %760 = vmatprep.subr.mxu0 0.0
    %761 = vmatpush1.msra.mxu0 %v730
    %762 = vmatprep.subr.mxu0 0.0
    %763 = vmatpush1.msra.mxu0 %v734
    %764 = vmatprep.subr.mxu0 0.0
    %765 = vmatpush1.msra.mxu0 %v740
    %766 = vmatprep.subr.mxu0 0.0
    %767 = vmatpush1.msra.mxu0 %v744
    %768 = vmatprep.subr.mxu0 0.0
    %769 = vmatpush1.msra.mxu0 %v750
    %770 = vmatprep.subr.mxu0 0.0
    %771 = vmatpush1.msra.mxu0 %v754
    %772 = vmatprep.subr.mxu0 0.0
    %773 = vmatpush1.msra.mxu0 0.0
    %774 = vmatprep.subr.mxu0 0.0
    %775 = vmatpush1.msra.mxu0 0.0
    %776 = vmatprep.subr.mxu0 0.0
    %777 = vmatpush1.msra.mxu0 0.0
    %778 = vmatprep.subr.mxu0 0.0
    %779 = vmatpush1.msra.mxu0 0.0
    %780 = vmatprep.subr.mxu0 0.0
    %781 = vmatpush1.msra.mxu0 0.0
    %782 = vmatprep.subr.mxu0 0.0
    %783 = vmatpush1.msra.mxu0 0.0
    %784 = vmatprep.subr.mxu0 0.0
    %785 = vmatpush1.msra.mxu0 0.0
    %786 = vmatprep.subr.mxu0 0.0
    %787 = vmatpush1.msra.mxu0 0.0
    %788 = vmatprep.subr.mxu0 0.0
    %789 = vmatpush1.msra.mxu0 0.0
    %790 = vmatprep.subr.mxu0 0.0
    %791 = vmatpush1.msra.mxu0 0.0
    %792 = vmatprep.subr.mxu0 0.0
    %793 = vmatpush1.msra.mxu0 0.0
    %794 = vmatprep.subr.mxu0 0.0
    %795 = vmatpush1.msra.mxu0 0.0
    %796 = vmatprep.subr.mxu0 0.0
    %797 = vmatpush1.msra.mxu0 0.0
    %798 = vmatprep.subr.mxu0 0.0
    %799 = vmatpush1.msra.mxu0 0.0
    %800 = vmatprep.subr.mxu0 0.0
    %801 = vmatpush1.msra.mxu0 0.0
    %802 = vmatprep.subr.mxu0 0.0
    %803 = vmatpush1.msra.mxu0 0.0
    %804 = vmatprep.subr.mxu0 0.0
    %805 = vmatpush1.msra.mxu0 0.0
    %806 = vmatprep.subr.mxu0 0.0
    %807 = vmatpush1.msra.mxu0 0.0
    %808 = vmatprep.subr.mxu0 0.0
    %809 = vmatpush1.msra.mxu0 0.0
    %810 = vmatprep.subr.mxu0 0.0
    %811 = vmatpush1.msra.mxu0 0.0
    %812 = vmatprep.subr.mxu0 0.0
    %813 = vmatpush1.msra.mxu0 0.0
    %814 = vmatprep.subr.mxu0 0.0
    %815 = vmatpush1.msra.mxu0 0.0
    %816 = vmatprep.subr.mxu0 0.0
    %817 = vmatpush1.msra.mxu0 0.0
    %818 = vmatprep.subr.mxu0 0.0
    %819 = vmatpush1.msra.mxu0 0.0
    %820 = vmatprep.mubr.f32.mxu0 0.0
    %821 = vmatmul.mubr.f32.gmra.mrb[0].mxu0 %v416
    %v822 = vpop.f32.mrb[0].mxu0
    %v823 = vadd.f32 0.0, %v822
    %v824 = vpop.f32.mrb[0].mxu0
    %825 = vmatprep.mubr.f32.mxu0 0.0
    %826 = vmatmul.mubr.f32.gmra.mrb[0].mxu0 %v419
    %v827 = vpop.f32.mrb[0].mxu0
    %v828 = vadd.f32 0.0, %v827
    %v829 = vpop.f32.mrb[0].mxu0
    %830 = vmatprep.mubr.f32.mxu0 0.0
    %831 = vmatmul.mubr.f32.gmra.mrb[0].mxu0 %v422
    %v832 = vpop.f32.mrb[0].mxu0
    %v833 = vadd.f32 0.0, %v832
    %v834 = vpop.f32.mrb[0].mxu0
    %835 = vmatprep.mubr.f32.mxu0 0.0
    %836 = vmatmul.mubr.f32.gmra.mrb[0].mxu0 %v425
    %v837 = vpop.f32.mrb[0].mxu0
    %v838 = vadd.f32 0.0, %v837
    %v839 = vpop.f32.mrb[0].mxu0
    %840 = vmatprep.mubr.f32.mxu0 0.0
    %841 = vmatmul.mubr.f32.gmra.mrb[0].mxu0 %v428
    %v842 = vpop.f32.mrb[0].mxu0
    %v843 = vadd.f32 0.0, %v842
    %v844 = vpop.f32.mrb[0].mxu0
    %845 = vmatprep.mubr.f32.mxu0 0.0
    %846 = vmatmul.mubr.f32.gmra.mrb[0].mxu0 %v431
    %v847 = vpop.f32.mrb[0].mxu0
    %v848 = vadd.f32 0.0, %v847
    %v849 = vpop.f32.mrb[0].mxu0
    %850 = vmatprep.mubr.f32.mxu0 0.0
    %851 = vmatmul.mubr.f32.gmra.mrb[0].mxu0 %v434
    %v852 = vpop.f32.mrb[0].mxu0
    %v853 = vadd.f32 0.0, %v852
    %v854 = vpop.f32.mrb[0].mxu0
    %855 = vmatprep.mubr.f32.mxu0 0.0
    %856 = vmatmul.mubr.f32.gmra.mrb[0].mxu0 %v437
    %v857 = vpop.f32.mrb[0].mxu0
    %v858 = vadd.f32 0.0, %v857
    %v859 = vpop.f32.mrb[0].mxu0
    %860 = vdwg.mxu0
    %v861 = vmul.f32 %v823, %v214
    %v862 = vmul.f32 %v828, %v219
    %v863 = vmul.f32 %v833, %v224
    %v864 = vmul.f32 %v838, %v229
    %v865 = vmul.f32 %v843, %v234
    %v866 = vmul.f32 %v848, %v239
    %v867 = vmul.f32 %v853, %v244
    %v868 = vmul.f32 %v858, %v249
    %v869 = vadd.f32 %v718, %v861
    %v870 = vadd.f32 %v722, %v862
    %v871 = vadd.f32 %v728, %v863
    %v872 = vadd.f32 %v732, %v864
    %v873 = vadd.f32 %v738, %v865
    %v874 = vadd.f32 %v742, %v866
    %v875 = vadd.f32 %v748, %v867
    %v876 = vadd.f32 %v752, %v868
    %v877 = vld [vmem:[%s8] sm:$0x1]
    %v879 = vlaneseq
    %v880 = vshrl.u32 %v879, 7
    %v881 = vsub.s32 0, %v880
    %v882 = vrot.slane %v877, %v881
    %v884 = vadd.f32 %v869, %v882
    %v885 = vadd.f32 %v870, %v882
    %v886 = vadd.f32 %v871, %v882
    %v887 = vadd.f32 %v872, %v882
    %v888 = vadd.f32 %v873, %v882
    %v889 = vadd.f32 %v874, %v882
    %v890 = vadd.f32 %v875, %v882
    %v891 = vadd.f32 %v876, %v882
    %892 = vst [vmem:[#allocation2] sm:$0xff] %v884
    %893 = vst [vmem:[#allocation2 + $0x8] sm:$0xff] %v885
    %894 = vst [vmem:[#allocation2 + $0x10] sm:$0xff] %v886
    %895 = vst [vmem:[#allocation2 + $0x18] sm:$0xff] %v887
    %896 = vst [vmem:[#allocation2 + $0x20] sm:$0xff] %v888
    %897 = vst [vmem:[#allocation2 + $0x28] sm:$0xff] %v889
    %898 = vst [vmem:[#allocation2 + $0x30] sm:$0xff] %v890
    %899 = vst [vmem:[#allocation2 + $0x38] sm:$0xff] %v891
    // Predicated region
    $region38: #{graphsage_forward.1} parent=1 // pred_check
      _
    $region39: #{graphsage_forward.1} parent=1 // pred_check_branch
      %901 = sbr.rel (0) target = $region41
    $region40: #{graphsage_forward.1} parent=1 // pred_region
      %s903 = ssub.s32 1024, 1024
      %904 = vsyncadd [#allocation3], %s903
      %s905 = sshll.u32 [#allocation2], 4
      %s906 = int_to_ptr.vmem [resolvable:$true] %s905
      %911 = dma.vmem_to_hbm [thread:$0]  %s906, 1024, %s9, [#allocation3], 128, 128, 8
    $region41: #{graphsage_forward.1} parent=1 // pred_fallthru
      _
    // Predicated region
    $region42: #{graphsage_forward.1} parent=1 // pred_check
      _
    $region43: #{graphsage_forward.1} parent=1 // pred_check_branch
      %913 = sbr.rel (0) target = $region45
    $region44: #{graphsage_forward.1} parent=1 // pred_region
      %914 = dma.done [#allocation3], 1024
    $region45: #{graphsage_forward.1} parent=1 // pred_fallthru
      _
    %915 = vsyncpa [#allocation3], 1

</llo_original>
